<compile_context>
chip_gen: v5e
topology: v5e:2x2
jax: 0.10.0
libtpu: 0.0.40
codegen_flags: <defaults>
</compile_context>

<pallas_src>
import jax
import jax.numpy as jnp
from jax.experimental import pallas as pl
from jax.experimental.pallas import tpu as pltpu


def _vmem_spec():
    return pl.BlockSpec(memory_space=pltpu.MemorySpace.VMEM)


def _pick_row_tile(n, tm_target):
    """Pick a row-tile size TM with n % TM == 0 handled by padding outside."""
    return n if n <= tm_target else tm_target


# ---------------------------------------------------------------------------
# Kernel 1: fused per-token head + GRU input projection, tiled over B*S rows.
# ---------------------------------------------------------------------------
def token_gi_kernel(h_ref, w1_ref, b1_ref, w2_ref, b2_ref, wih_ref, bih_ref,
                    score_ref, gi_ref):
    # h_ref : (TM, H) tile of hidden
    # w1    : (H, H)   b1 : (1, H)        dense
    # w2    : (1, H)   b2 : (1, 1)        out_proj (row vector form)
    # wih   : (H, 3H)  bih: (1, 3H)       GRU input projection (gate order r,z,n)
    # score_ref : (1, 1, TM) lane-dense per-token scores
    # gi_ref    : (TM, 3H)   precomputed GRU input gates
    x = h_ref[...]                                                  # (TM, H)
    y = jnp.tanh(
        jnp.dot(x, w1_ref[...], preferred_element_type=jnp.float32) + b1_ref[...]
    )                                                               # (TM, H)
    # Linear(H, 1) as VPU multiply + XLU lane reduction (MXU stays free).
    s = jnp.sum(y * w2_ref[...], axis=-1)                           # (TM,)
    tm = s.shape[0]
    score_ref[...] = (s[None, :] + b2_ref[...]).reshape(1, 1, tm)   # lane-dense

    # GRU input projection, hoisted out of the recurrence.
    gi_ref[...] = (
        jnp.dot(x, wih_ref[...], preferred_element_type=jnp.float32) + bih_ref[...]
    )


# ---------------------------------------------------------------------------
# Kernel 2: GRU recurrence (streaming one timestep per grid step) + func head.
# ---------------------------------------------------------------------------
def gru_func_kernel(gi_ref, whh_ref, bhh_ref, wfd_ref, bfd_ref, wfo_ref, bfo_ref,
                    fo_ref, h_state):
    # gi_ref : (B, 1, 3H) block for timestep t (input gates already projected)
    # whh    : (H, 3H)  bhh : (1, 3H)
    # wfd    : (H, H)   bfd : (1, H)     func_dense
    # wfo    : (H, 2)   bfo : (1, 2)     func_out_proj
    # fo_ref : (B, 2) output (written at the final step)
    # h_state: (B, H) VMEM scratch holding the recurrent state
    t = pl.program_id(0)
    H = whh_ref.shape[0]

    @pl.when(t == 0)
    def _():
        h_state[...] = jnp.zeros_like(h_state)

    h_prev = h_state[...]                                           # (B, H)
    gi = gi_ref[:, 0, :]                                            # (B, 3H)
    gh = (
        jnp.dot(h_prev, whh_ref[...], preferred_element_type=jnp.float32)
        + bhh_ref[...]
    )                                                               # (B, 3H)

    r = jax.nn.sigmoid(gi[:, 0:H] + gh[:, 0:H])
    z = jax.nn.sigmoid(gi[:, H:2 * H] + gh[:, H:2 * H])
    n = jnp.tanh(gi[:, 2 * H:3 * H] + r * gh[:, 2 * H:3 * H])
    h_new = (1.0 - z) * n + z * h_prev
    h_state[...] = h_new

    @pl.when(t == pl.num_programs(0) - 1)
    def _():
        f = jnp.tanh(
            jnp.dot(h_new, wfd_ref[...], preferred_element_type=jnp.float32)
            + bfd_ref[...]
        )
        fo_ref[...] = (
            jnp.dot(f, wfo_ref[...], preferred_element_type=jnp.float32)
            + bfo_ref[...]
        )


# ---------------------------------------------------------------------------
# Wrapper
# ---------------------------------------------------------------------------
def prepare_params(params):
    """One-time weight relayout to kernel-friendly (in, out) matrices."""
    return {
        "dense_w_t": params["dense_w"].T,                  # (H, H)
        "dense_b": params["dense_b"][None, :],             # (1, H)
        "out_w_row": params["out_w"],                      # (1, H)
        "out_b": params["out_b"][None, :],                 # (1, 1)
        "w_ih_t": params["w_ih"].T,                        # (H, 3H)
        "b_ih": params["b_ih"][None, :],                   # (1, 3H)
        "w_hh_t": params["w_hh"].T,                        # (H, 3H)
        "b_hh": params["b_hh"][None, :],                   # (1, 3H)
        "func_dense_w_t": params["func_dense_w"].T,        # (H, H)
        "func_dense_b": params["func_dense_b"][None, :],   # (1, H)
        "func_out_w_t": params["func_out_w"].T,            # (H, 2)
        "func_out_b": params["func_out_b"][None, :],       # (1, 2)
    }


def classification_head_forward(hidden, kp, *, tm_target=512):
    # tm_target=512 keeps the fused-kernel VMEM footprint (weights + 2x
    # double-buffered (TM,H)/(TM,3H) tiles) comfortably inside v7x's 64 MiB;
    # v5e/v6e could use a larger tile, but this is mem-bound either way.
    B, S, H = hidden.shape
    N = B * S
    TM = _pick_row_tile(N, tm_target)
    n_tiles = pl.cdiv(N, TM)
    N_pad = n_tiles * TM

    h2d = hidden.reshape(N, H)
    if N_pad != N:
        h2d = jnp.pad(h2d, ((0, N_pad - N), (0, 0)))

    scores, gi_all = pl.pallas_call(
        token_gi_kernel,
        grid=(n_tiles,),
        in_specs=[
            pl.BlockSpec((TM, H), lambda i: (i, 0)),       # hidden tile (pipelined)
            _vmem_spec(),                                  # dense W
            _vmem_spec(),                                  # dense b
            _vmem_spec(),                                  # out_proj w (row)
            _vmem_spec(),                                  # out_proj b
            _vmem_spec(),                                  # W_ih^T
            _vmem_spec(),                                  # b_ih
        ],
        out_specs=(
            pl.BlockSpec((1, 1, TM), lambda i: (i, 0, 0)),   # lane-dense scores
            pl.BlockSpec((TM, 3 * H), lambda i: (i, 0)),     # gi tiles
        ),
        out_shape=(
            jax.ShapeDtypeStruct((n_tiles, 1, TM), jnp.float32),
            jax.ShapeDtypeStruct((N_pad, 3 * H), jnp.float32),
        ),
        compiler_params=pltpu.CompilerParams(
            dimension_semantics=("parallel",),
            vmem_limit_bytes=48 * 1024 * 1024,
        ),
    )(h2d, kp["dense_w_t"], kp["dense_b"], kp["out_w_row"], kp["out_b"],
      kp["w_ih_t"], kp["b_ih"])

    x_out = scores.reshape(N_pad)[:N].reshape(B, S)
    gi3 = gi_all[:N].reshape(B, S, 3 * H)          # batch-major; no transpose

    func_out = pl.pallas_call(
        gru_func_kernel,
        grid=(S,),
        in_specs=[
            pl.BlockSpec((B, 1, 3 * H), lambda t: (0, t, 0)),  # stream one step
            _vmem_spec(),                                      # W_hh^T
            _vmem_spec(),                                      # b_hh
            _vmem_spec(),                                      # func_dense W
            _vmem_spec(),                                      # func_dense b
            _vmem_spec(),                                      # func_out W
            _vmem_spec(),                                      # func_out b
        ],
        out_specs=pl.BlockSpec((B, 2), lambda t: (0, 0)),
        out_shape=jax.ShapeDtypeStruct((B, 2), jnp.float32),
        scratch_shapes=[pltpu.VMEM((B, H), jnp.float32)],
        compiler_params=pltpu.CompilerParams(
            dimension_semantics=("arbitrary",),
        ),
    )(gi3, kp["w_hh_t"], kp["b_hh"], kp["func_dense_w_t"], kp["func_dense_b"],
      kp["func_out_w_t"], kp["func_out_b"])

    return x_out, func_out


# ---------------------------------------------------------------------------
# Pure-JAX reference (mirrors the PyTorch module in eval mode)
# ---------------------------------------------------------------------------
def reference_forward(hidden, params):
    B, S, H = hidden.shape
    x = jnp.tanh(hidden @ params["dense_w"].T + params["dense_b"])
    x = x @ params["out_w"].T + params["out_b"]
    x = x[..., 0]

    h = jnp.zeros((B, H), jnp.float32)
    for t in range(S):
        x_t = hidden[:, t, :]
        gi = x_t @ params["w_ih"].T + params["b_ih"]
        gh = h @ params["w_hh"].T + params["b_hh"]
        r = jax.nn.sigmoid(gi[:, :H] + gh[:, :H])
        z = jax.nn.sigmoid(gi[:, H:2 * H] + gh[:, H:2 * H])
        n = jnp.tanh(gi[:, 2 * H:] + r * gh[:, 2 * H:])
        h = (1.0 - z) * n + z * h
    f = jnp.tanh(h @ params["func_dense_w"].T + params["func_dense_b"])
    f = f @ params["func_out_w"].T + params["func_out_b"]
    return x, f


def init_params(key, H):
    ks = jax.random.split(key, 12)
    u = lambda k, shape, s: jax.random.uniform(k, shape, jnp.float32, -s, s)
    s = 1.0 / jnp.sqrt(H)
    return {
        "dense_w": u(ks[0], (H, H), s), "dense_b": u(ks[1], (H,), s),
        "out_w": u(ks[2], (1, H), s), "out_b": u(ks[3], (1,), s),
        "w_ih": u(ks[4], (3 * H, H), s), "w_hh": u(ks[5], (3 * H, H), s),
        "b_ih": u(ks[6], (3 * H,), s), "b_hh": u(ks[7], (3 * H,), s),
        "func_dense_w": u(ks[8], (H, H), s), "func_dense_b": u(ks[9], (H,), s),
        "func_out_w": u(ks[10], (2, H), s), "func_out_b": u(ks[11], (2,), s),
    }


if __name__ == "__main__":
    B, S, H = 2, 8, 32   # small shapes; the real model uses H = 768
    key = jax.random.PRNGKey(0)
    k_x, k_p = jax.random.split(key)
    hidden = jax.random.normal(k_x, (B, S, H), jnp.float32)
    params = init_params(k_p, H)
    kparams = prepare_params(params)   # one-time weight relayout

    x_out, func_out = classification_head_forward(hidden, kparams)
    x_out = jax.block_until_ready(x_out)
    func_out = jax.block_until_ready(func_out)

    x_ref, f_ref = reference_forward(hidden, params)
    assert x_out.shape == (B, S) and func_out.shape == (B, 2)
    assert jnp.allclose(x_out, x_ref, atol=1e-5, rtol=1e-5)
    assert jnp.allclose(func_out, f_ref, atol=1e-5, rtol=1e-5)

    print("KERNEL_OK")
</pallas_src>

<mosaic_0001>
module attributes {stable_mosaic.version = 11 : i64} {
  func.func @token_gi_kernel(%arg0: i32, %arg1: memref<16x32xf32, #tpu.memory_space<vmem>>, %arg2: memref<32x32xf32, #tpu.memory_space<vmem>>, %arg3: memref<1x32xf32, #tpu.memory_space<vmem>>, %arg4: memref<1x32xf32, #tpu.memory_space<vmem>>, %arg5: memref<1x1xf32, #tpu.memory_space<vmem>>, %arg6: memref<32x96xf32, #tpu.memory_space<vmem>>, %arg7: memref<1x96xf32, #tpu.memory_space<vmem>>, %arg8: memref<1x1x16xf32, #tpu.memory_space<vmem>>, %arg9: memref<16x96xf32, #tpu.memory_space<vmem>>) attributes {dimension_semantics = [#tpu.dimension_semantics<parallel>], iteration_bounds = array<i64: 1>, scalar_prefetch = 0 : i64, scratch_operands = 0 : i64, tpu.core_type = #tpu.core_type<tc>, window_params = [{transform_indices = @transform_0, window_bounds = array<i64: 16, 32>}, {pipeline_mode = #tpu.pipeline_mode<synchronous>, transform_indices = @transform_1, window_bounds = array<i64: 32, 32>}, {pipeline_mode = #tpu.pipeline_mode<synchronous>, transform_indices = @transform_2, window_bounds = array<i64: 1, 32>}, {pipeline_mode = #tpu.pipeline_mode<synchronous>, transform_indices = @transform_3, window_bounds = array<i64: 1, 32>}, {pipeline_mode = #tpu.pipeline_mode<synchronous>, transform_indices = @transform_4, window_bounds = array<i64: 1, 1>}, {pipeline_mode = #tpu.pipeline_mode<synchronous>, transform_indices = @transform_5, window_bounds = array<i64: 32, 96>}, {pipeline_mode = #tpu.pipeline_mode<synchronous>, transform_indices = @transform_6, window_bounds = array<i64: 1, 96>}, {transform_indices = @transform_7, window_bounds = array<i64: 1, 1, 16>}, {transform_indices = @transform_8, window_bounds = array<i64: 16, 96>}]} {
    %c0 = arith.constant 0 : index
    %c0_0 = arith.constant 0 : index
    %0 = vector.load %arg1[%c0, %c0_0] : memref<16x32xf32, #tpu.memory_space<vmem>>, vector<16x32xf32>
    %c0_1 = arith.constant 0 : index
    %c0_2 = arith.constant 0 : index
    %1 = vector.load %arg2[%c0_1, %c0_2] : memref<32x32xf32, #tpu.memory_space<vmem>>, vector<32x32xf32>
    %cst = arith.constant dense<0.000000e+00> : vector<16x32xf32>
    %2 = tpu.matmul %0, %1, %cst {dimension_numbers = #tpu.dot_dimension_numbers<[1], [0], [0], [1], [0, 0, 1, 1], [], []>} : vector<16x32xf32>, vector<32x32xf32>, vector<16x32xf32> -> vector<16x32xf32>
    %c0_3 = arith.constant 0 : index
    %c0_4 = arith.constant 0 : index
    %3 = vector.load %arg3[%c0_3, %c0_4] : memref<1x32xf32, #tpu.memory_space<vmem>>, vector<1x32xf32>
    %4 = vector.broadcast %3 : vector<1x32xf32> to vector<16x32xf32>
    %5 = arith.addf %2, %4 : vector<16x32xf32>
    %6 = math.tanh %5 : vector<16x32xf32>
    %c0_5 = arith.constant 0 : index
    %c0_6 = arith.constant 0 : index
    %7 = vector.load %arg4[%c0_5, %c0_6] : memref<1x32xf32, #tpu.memory_space<vmem>>, vector<1x32xf32>
    %8 = vector.broadcast %7 : vector<1x32xf32> to vector<16x32xf32>
    %9 = arith.mulf %6, %8 : vector<16x32xf32>
    %cst_7 = arith.constant dense<0.000000e+00> : vector<16xf32>
    %10 = vector.multi_reduction <add>, %9, %cst_7 [1] : vector<16x32xf32> to vector<16xf32>
    %11 = vector.shape_cast %10 : vector<16xf32> to vector<1x16xf32>
    %c0_8 = arith.constant 0 : index
    %c0_9 = arith.constant 0 : index
    %12 = vector.load %arg5[%c0_8, %c0_9] : memref<1x1xf32, #tpu.memory_space<vmem>>, vector<1x1xf32>
    %13 = vector.broadcast %12 : vector<1x1xf32> to vector<1x16xf32>
    %14 = arith.addf %11, %13 : vector<1x16xf32>
    %15 = vector.shape_cast %14 : vector<1x16xf32> to vector<1x1x16xf32>
    %c0_10 = arith.constant 0 : index
    %c0_11 = arith.constant 0 : index
    %c0_12 = arith.constant 0 : index
    %16 = vector.load %arg8[%c0_10, %c0_11, %c0_12] : memref<1x1x16xf32, #tpu.memory_space<vmem>>, vector<1x1x16xf32>
    tpu.vector_store %arg8[%c0_10, %c0_11, %c0_12], %15 {strides = array<i32>} : memref<1x1x16xf32, #tpu.memory_space<vmem>>, vector<1x1x16xf32>,
    %c0_13 = arith.constant 0 : index
    %c0_14 = arith.constant 0 : index
    %17 = vector.load %arg6[%c0_13, %c0_14] : memref<32x96xf32, #tpu.memory_space<vmem>>, vector<32x96xf32>
    %cst_15 = arith.constant dense<0.000000e+00> : vector<16x96xf32>
    %18 = tpu.matmul %0, %17, %cst_15 {dimension_numbers = #tpu.dot_dimension_numbers<[1], [0], [0], [1], [0, 0, 1, 1], [], []>} : vector<16x32xf32>, vector<32x96xf32>, vector<16x96xf32> -> vector<16x96xf32>
    %c0_16 = arith.constant 0 : index
    %c0_17 = arith.constant 0 : index
    %19 = vector.load %arg7[%c0_16, %c0_17] : memref<1x96xf32, #tpu.memory_space<vmem>>, vector<1x96xf32>
    %20 = vector.broadcast %19 : vector<1x96xf32> to vector<16x96xf32>
    %21 = arith.addf %18, %20 : vector<16x96xf32>
    %c0_18 = arith.constant 0 : index
    %c0_19 = arith.constant 0 : index
    %22 = vector.load %arg9[%c0_18, %c0_19] : memref<16x96xf32, #tpu.memory_space<vmem>>, vector<16x96xf32>
    tpu.vector_store %arg9[%c0_18, %c0_19], %21 {strides = array<i32>} : memref<16x96xf32, #tpu.memory_space<vmem>>, vector<16x96xf32>,
    return
  }
  func.func @transform_0(%arg0: i32) -> (i32, i32) {
    %c0_i32 = arith.constant 0 : i32
    %c0_i32_0 = arith.constant 0 : i32
    return %arg0, %c0_i32 : i32, i32
  }
  func.func @transform_1(%arg0: i32) -> (i32, i32) {
    %c0_i32 = arith.constant 0 : i32
    %c0_i32_0 = arith.constant 0 : i32
    %c0_i32_1 = arith.constant 0 : i32
    return %c0_i32, %c0_i32_0 : i32, i32
  }
  func.func @transform_2(%arg0: i32) -> (i32, i32) {
    %c0_i32 = arith.constant 0 : i32
    %c0_i32_0 = arith.constant 0 : i32
    %c0_i32_1 = arith.constant 0 : i32
    return %c0_i32, %c0_i32_0 : i32, i32
  }
  func.func @transform_3(%arg0: i32) -> (i32, i32) {
    %c0_i32 = arith.constant 0 : i32
    %c0_i32_0 = arith.constant 0 : i32
    %c0_i32_1 = arith.constant 0 : i32
    return %c0_i32, %c0_i32_0 : i32, i32
  }
  func.func @transform_4(%arg0: i32) -> (i32, i32) {
    %c0_i32 = arith.constant 0 : i32
    %c0_i32_0 = arith.constant 0 : i32
    %c0_i32_1 = arith.constant 0 : i32
    return %c0_i32, %c0_i32_0 : i32, i32
  }
  func.func @transform_5(%arg0: i32) -> (i32, i32) {
    %c0_i32 = arith.constant 0 : i32
    %c0_i32_0 = arith.constant 0 : i32
    %c0_i32_1 = arith.constant 0 : i32
    return %c0_i32, %c0_i32_0 : i32, i32
  }
  func.func @transform_6(%arg0: i32) -> (i32, i32) {
    %c0_i32 = arith.constant 0 : i32
    %c0_i32_0 = arith.constant 0 : i32
    %c0_i32_1 = arith.constant 0 : i32
    return %c0_i32, %c0_i32_0 : i32, i32
  }
  func.func @transform_7(%arg0: i32) -> (i32, i32, i32) {
    %c0_i32 = arith.constant 0 : i32
    %c0_i32_0 = arith.constant 0 : i32
    %c0_i32_1 = arith.constant 0 : i32
    return %arg0, %c0_i32, %c0_i32_0 : i32, i32, i32
  }
  func.func @transform_8(%arg0: i32) -> (i32, i32) {
    %c0_i32 = arith.constant 0 : i32
    %c0_i32_0 = arith.constant 0 : i32
    return %arg0, %c0_i32 : i32, i32
  }
}

</mosaic_0001>

<llo_original>
// kernel: tpu_custom_call.1
$region0: #{tpu_custom_call.1}
  #allocation0 [shape = 'u32[]', space=smem, size = 0x4, offset = 0x4, fixed_abs, tag = 'smem constant byte address 0x4 - core index']
  #allocation1 [shape = 'u32[72,128]{1,0:T(1,128)}', space=vmem, size = 0x9000, scoped, tag = 'internal scratch']
  #allocation2 [shape = 'f32[1,1]{1,0:T(1,128)S(1)}', space=vmem, size = 0x200, scoped, tag = 'scoped memory for tpu_custom_call.1']
  %s0 = inlined_call_operand.hbm [shape: f32[16,32], index: 0, kind: input, shape index: {}]
  %s1 = inlined_call_operand.hbm [shape: f32[32,32], index: 1, kind: input, shape index: {}]
  %s2 = inlined_call_operand.vmem [shape: f32[1,32], index: 2, kind: input, shape index: {}]
  %s3 = inlined_call_operand.vmem [shape: f32[1,32], index: 3, kind: input, shape index: {}]
  %s4 = inlined_call_operand.<no memory space> [shape: f32[1,1], index: 4, kind: input, shape index: {}]
  %s5 = inlined_call_operand.hbm [shape: f32[32,96], index: 5, kind: input, shape index: {}]
  %s6 = inlined_call_operand.vmem [shape: f32[1,96], index: 6, kind: input, shape index: {}]
  %s7 = inlined_call_operand.hbm [shape: f32[1,1,16], index: 7, kind: output, shape index: {0}]
  %s8 = inlined_call_operand.hbm [shape: f32[16,96], index: 8, kind: output, shape index: {1}]
  %9 = xla_tuple %s7, %s8
  %s10 = sld [smem:[#allocation0]]
  $region58: #{tpu_custom_call.1} parent=0
    _
  %s12 = ssub.s32 1, %s10
  %s13 = scalar_select 0, %s12, %s10
  %v14 = vstv %s4
  %15 = vst [vmem:[#allocation2] sm:$0x1] %v14
  $region1: #{tpu_custom_call.1} parent=0
    #allocation3 [shape = 'u8[8192]{0}', space=vmem, size = 0x2000, scoped, tag = 'input window, operand 0, single buffered']
    #allocation4 [shape = 's32[1]{0}', space=sflag, size = 0x4, scoped, tag = 'scoped memory for tpu_custom_call.1']
    #allocation5 [shape = 's32[1]{0}', space=sflag, size = 0x4, scoped, tag = 'scoped memory for tpu_custom_call.1']
    #allocation6 [shape = 'u8[16384]{0}', space=vmem, size = 0x4000, scoped, tag = 'input window, operand 1, single buffered']
    #allocation7 [shape = 's32[1]{0}', space=sflag, size = 0x4, scoped, tag = 'scoped memory for tpu_custom_call.1']
    #allocation8 [shape = 'u8[16384]{0}', space=vmem, size = 0x4000, scoped, tag = 'input window, operand 5, single buffered']
    #allocation9 [shape = 'u8[512]{0}', space=vmem, size = 0x400, scoped, tag = 'output window, operand 0, single buffered']
    #allocation10 [shape = 'u8[8192]{0}', space=vmem, size = 0x2000, scoped, tag = 'output window, operand 1, single buffered']
    #allocation11 [shape = 's32[1]{0}', space=sflag, size = 0x4, scoped, tag = 'scoped memory for tpu_custom_call.1']
    %16 = vsyncpa [#allocation4], 0
    %17 = vsyncpa [#allocation7], 0
    %18 = vsyncpa [#allocation5], 0
    %19 = vsyncpa [#allocation11], 0
    // Predicated region
    $region2: #{tpu_custom_call.1} parent=1 // pred_check
      _
    $region3: #{tpu_custom_call.1} parent=1 // pred_check_branch
      %21 = sbr.rel (0) target = $region5
    $region4: #{tpu_custom_call.1} parent=1 // pred_region
      %23 = vsyncadd [#allocation4], 0
      %s24 = sshll.u32 %s0, 4
      %s25 = int_to_ptr.hbm [resolvable:$true] %s24
      %s26 = sshll.u32 [#allocation3], 4
      %s27 = int_to_ptr.vmem [resolvable:$true] %s26
      %32 = dma.hbm_to_vmem [thread:$0]  %s25, 256, %s27, [#allocation4], 128, 128, 8
    $region5: #{tpu_custom_call.1} parent=1 // pred_fallthru
      _
    // Predicated region
    $region6: #{tpu_custom_call.1} parent=1 // pred_check
      _
    $region7: #{tpu_custom_call.1} parent=1 // pred_check_branch
      %34 = sbr.rel (0) target = $region9
    $region8: #{tpu_custom_call.1} parent=1 // pred_region
      %36 = vsyncadd [#allocation7], 0
      %s37 = sshll.u32 %s1, 4
      %s38 = int_to_ptr.hbm [resolvable:$true] %s37
      %s39 = sshll.u32 [#allocation6], 4
      %s40 = int_to_ptr.vmem [resolvable:$true] %s39
      %45 = dma.hbm_to_vmem [thread:$0]  %s38, 512, %s40, [#allocation7], 128, 128, 8
    $region9: #{tpu_custom_call.1} parent=1 // pred_fallthru
      _
    // Predicated region
    $region10: #{tpu_custom_call.1} parent=1 // pred_check
      _
    $region11: #{tpu_custom_call.1} parent=1 // pred_check_branch
      %47 = sbr.rel (0) target = $region13
    $region12: #{tpu_custom_call.1} parent=1 // pred_region
      _
    $region13: #{tpu_custom_call.1} parent=1 // pred_fallthru
      _
    // Predicated region
    $region14: #{tpu_custom_call.1} parent=1 // pred_check
      _
    $region15: #{tpu_custom_call.1} parent=1 // pred_check_branch
      %49 = sbr.rel (0) target = $region17
    $region16: #{tpu_custom_call.1} parent=1 // pred_region
      _
    $region17: #{tpu_custom_call.1} parent=1 // pred_fallthru
      _
    // Predicated region
    $region18: #{tpu_custom_call.1} parent=1 // pred_check
      _
    $region19: #{tpu_custom_call.1} parent=1 // pred_check_branch
      %51 = sbr.rel (0) target = $region21
    $region20: #{tpu_custom_call.1} parent=1 // pred_region
      _
    $region21: #{tpu_custom_call.1} parent=1 // pred_fallthru
      _
    // Predicated region
    $region22: #{tpu_custom_call.1} parent=1 // pred_check
      _
    $region23: #{tpu_custom_call.1} parent=1 // pred_check_branch
      %53 = sbr.rel (0) target = $region25
    $region24: #{tpu_custom_call.1} parent=1 // pred_region
      %55 = vsyncadd [#allocation7], 0
      %s56 = sshll.u32 %s5, 4
      %s57 = int_to_ptr.hbm [resolvable:$true] %s56
      %s58 = sshll.u32 [#allocation8], 4
      %s59 = int_to_ptr.vmem [resolvable:$true] %s58
      %64 = dma.hbm_to_vmem [thread:$0]  %s57, 512, %s59, [#allocation7], 128, 128, 8
    $region25: #{tpu_custom_call.1} parent=1 // pred_fallthru
      _
    // Predicated region
    $region26: #{tpu_custom_call.1} parent=1 // pred_check
      _
    $region27: #{tpu_custom_call.1} parent=1 // pred_check_branch
      %66 = sbr.rel (0) target = $region29
    $region28: #{tpu_custom_call.1} parent=1 // pred_region
      _
    $region29: #{tpu_custom_call.1} parent=1 // pred_fallthru
      _
    // Predicated region
    $region30: #{tpu_custom_call.1} parent=1 // pred_check
      _
    $region31: #{tpu_custom_call.1} parent=1 // pred_check_branch
      %68 = sbr.rel (0) target = $region33
    $region32: #{tpu_custom_call.1} parent=1 // pred_region
      %70 = dma.done [#allocation4], 256
    $region33: #{tpu_custom_call.1} parent=1 // pred_fallthru
      _
    // Predicated region
    $region34: #{tpu_custom_call.1} parent=1 // pred_check
      _
    $region35: #{tpu_custom_call.1} parent=1 // pred_check_branch
      %72 = sbr.rel (0) target = $region37
    $region36: #{tpu_custom_call.1} parent=1 // pred_region
      %74 = dma.done [#allocation7], 512
    $region37: #{tpu_custom_call.1} parent=1 // pred_fallthru
      _
    // Predicated region
    $region38: #{tpu_custom_call.1} parent=1 // pred_check
      _
    $region39: #{tpu_custom_call.1} parent=1 // pred_check_branch
      %76 = sbr.rel (0) target = $region41
    $region40: #{tpu_custom_call.1} parent=1 // pred_region
      %78 = dma.done [#allocation7], 512
    $region41: #{tpu_custom_call.1} parent=1 // pred_fallthru
      _
    %v79 = vld [vmem:[#allocation3] sm:$0xff]
    %v80 = vld [vmem:[#allocation3 + $0x8] sm:$0xff]
    %v81 = vld [vmem:[#allocation6] sm:$0xff]
    %v82 = vld [vmem:[#allocation6 + $0x8] sm:$0xff]
    %v83 = vld [vmem:[#allocation6 + $0x10] sm:$0xff]
    %v84 = vld [vmem:[#allocation6 + $0x18] sm:$0xff]
    %v85 = vld [vmem:[%s2] sm:$0x1]
    %v87 = vperm.slane %v85, 0
    %vm89 = vcmask 261120
    %v91 = vsel %vm89, %v79, 0
    %v94 = vsel %vm89, %v80, 0
    %96 = vmatpush.msra.mxu0 0.0
    %97 = vmatpush.msra.mxu0 0.0
    %98 = vmatpush.msra.mxu0 0.0
    %99 = vmatpush.msra.mxu0 0.0
    %100 = vmatpush.msra.mxu0 0.0
    %101 = vmatpush.msra.mxu0 0.0
    %102 = vmatpush.msra.mxu0 0.0
    %103 = vmatpush.msra.mxu0 0.0
    %104 = vmatpush.msra.mxu0 0.0
    %105 = vmatpush.msra.mxu0 0.0
    %106 = vmatpush.msra.mxu0 0.0
    %107 = vmatpush.msra.mxu0 0.0
    %108 = vmatpush.msra.mxu0 %v84
    %109 = vmatpush.msra.mxu0 %v83
    %110 = vmatpush.msra.mxu0 %v82
    %111 = vmatpush.msra.mxu0 %v81
    %112 = vmatmul.f32.gmra.mxu0 %v91
    %v113 = vpop.f32.mrf.mxu0
    %v114 = vadd.f32 %v87, %v113
    %115 = vmatmul.f32.gmra.mxu0 %v94
    %v116 = vpop.f32.mrf.mxu0
    %v117 = vadd.f32 %v87, %v116
    %118 = vdwg.mxu0
    %v119 = vtanh.pop %v114
    %v120 = vtanh.pop %v117
    %v121 = vld [vmem:[%s3] sm:$0x1]
    %v123 = vperm.slane %v121, 0
    %v125 = vmul.f32 %v119, %v123
    %v126 = vmul.f32 %v120, %v123
    %v127 = vsel %vm89, %v125, 0.0
    %128 = vadd.xlane.f32.xlu0 %v127
    %v129 = vpop.xlane.xlu0 %128
    %v130 = vsel %vm89, %v126, 0.0
    %131 = vadd.xlane.f32.xlu0 %v130
    %v132 = vpop.xlane.xlu0 %131
    %v133 = vld [vmem:[#allocation2] sm:$0x1]
    %135 = vset.pattern.permute.xlu0 0
    %136 = vperm.xlu0 %135, %v133
    %v137 = vpop.permute.xlu0 %136
    %v139 = vperm.slane %v137, 0
    %v140 = vadd.f32 %v129, %v139
    %v141 = vadd.f32 %v132, %v139
    %v144 = vlaneseq
    %v145 = vand.u32 %v144, 127
    %v146 = vperm.slane %v140, %v145
    %v147 = vadd.s32 %v145, 4294967288
    %v148 = vperm.slane %v141, %v147
    %vm149 = vcmask 130112
    %v150 = vsel %vm149, %v148, %v146
    %vm152 = vcmask 122880
    %153 = vst.msk [vmem:[#allocation9] sm:$0x1] %vm152, %v150
    %v154 = vld [vmem:[#allocation8] sm:$0xff]
    %v155 = vld [vmem:[#allocation8 + $0x8] sm:$0xff]
    %v156 = vld [vmem:[#allocation8 + $0x10] sm:$0xff]
    %v157 = vld [vmem:[#allocation8 + $0x18] sm:$0xff]
    %v158 = vld [vmem:[%s6] sm:$0x1]
    %v160 = vperm.slane %v158, 0
    %162 = vmatpush.msra.mxu0 0.0
    %163 = vmatpush.msra.mxu0 0.0
    %164 = vmatpush.msra.mxu0 0.0
    %165 = vmatpush.msra.mxu0 0.0
    %166 = vmatpush.msra.mxu0 0.0
    %167 = vmatpush.msra.mxu0 0.0
    %168 = vmatpush.msra.mxu0 0.0
    %169 = vmatpush.msra.mxu0 0.0
    %170 = vmatpush.msra.mxu0 0.0
    %171 = vmatpush.msra.mxu0 0.0
    %172 = vmatpush.msra.mxu0 0.0
    %173 = vmatpush.msra.mxu0 0.0
    %174 = vmatpush.msra.mxu0 %v157
    %175 = vmatpush.msra.mxu0 %v156
    %176 = vmatpush.msra.mxu0 %v155
    %177 = vmatpush.msra.mxu0 %v154
    %178 = vmatmul.f32.gmra.mxu0 %v91
    %v179 = vpop.f32.mrf.mxu0
    %v180 = vadd.f32 %v160, %v179
    %181 = vmatmul.f32.gmra.mxu0 %v94
    %v182 = vpop.f32.mrf.mxu0
    %v183 = vadd.f32 %v160, %v182
    %184 = vdwg.mxu0
    %vm185 = vcmask 785408
    %186 = vst.msk [vmem:[#allocation10] sm:$0xff] %vm185, %v180
    %187 = vst.msk [vmem:[#allocation10 + $0x8] sm:$0xff] %vm185, %v183
    // Predicated region
    $region42: #{tpu_custom_call.1} parent=1 // pred_check
      _
    $region43: #{tpu_custom_call.1} parent=1 // pred_check_branch
      %189 = sbr.rel (0) target = $region45
    $region44: #{tpu_custom_call.1} parent=1 // pred_region
      %191 = vsyncadd [#allocation5], 0
      %s193 = sshll.u32 [#allocation9], 4
      %s194 = int_to_ptr.vmem [resolvable:$true] %s193
      %s195 = sshll.u32 %s7, 4
      %s196 = int_to_ptr.hbm [resolvable:$true] %s195
      %198 = dma.vmem_to_hbm [thread:$0]  %s194, 16, %s196, [#allocation5]
    $region45: #{tpu_custom_call.1} parent=1 // pred_fallthru
      _
    // Predicated region
    $region46: #{tpu_custom_call.1} parent=1 // pred_check
      _
    $region47: #{tpu_custom_call.1} parent=1 // pred_check_branch
      %200 = sbr.rel (0) target = $region49
    $region48: #{tpu_custom_call.1} parent=1 // pred_region
      %202 = vsyncadd [#allocation11], 0
      %s203 = sshll.u32 [#allocation10], 4
      %s204 = int_to_ptr.vmem [resolvable:$true] %s203
      %s205 = sshll.u32 %s8, 4
      %s206 = int_to_ptr.hbm [resolvable:$true] %s205
      %211 = dma.vmem_to_hbm [thread:$0]  %s204, 256, %s206, [#allocation11], 128, 128, 8
    $region49: #{tpu_custom_call.1} parent=1 // pred_fallthru
      _
    // Predicated region
    $region50: #{tpu_custom_call.1} parent=1 // pred_check
      _
    $region51: #{tpu_custom_call.1} parent=1 // pred_check_branch
      %213 = sbr.rel (0) target = $region53
    $region52: #{tpu_custom_call.1} parent=1 // pred_region
      %215 = dma.done [#allocation5], 16
    $region53: #{tpu_custom_call.1} parent=1 // pred_fallthru
      _
    // Predicated region
    $region54: #{tpu_custom_call.1} parent=1 // pred_check
      _
    $region55: #{tpu_custom_call.1} parent=1 // pred_check_branch
      %217 = sbr.rel (0) target = $region57
    $region56: #{tpu_custom_call.1} parent=1 // pred_region
      %219 = dma.done [#allocation11], 256
    $region57: #{tpu_custom_call.1} parent=1 // pred_fallthru
      _
    %220 = vsyncpa [#allocation4], 1
    %221 = vsyncpa [#allocation7], 1
    %222 = vsyncpa [#allocation5], 1
    %223 = vsyncpa [#allocation11], 1

</llo_original>
